<compile_context>
chip_gen: v7x
topology: tpu7x:2x2x1
jax: 0.10.0
libtpu: 0.0.40
codegen_flags: <defaults>
</compile_context>

<pallas_src>
import jax
import jax.numpy as jnp
from jax.experimental import pallas as pl
from jax.experimental.pallas import tpu as pltpu


# ---------------------------------------------------------------------------
# Kernel
# ---------------------------------------------------------------------------
def make_wlp_kernel(num_layers, native_mask_mul):
    """Build the kernel for a static number of selected layers.

    native_mask_mul: apply the {0,1} mask multiply in the hidden-state dtype
    (bf16) before the f32 upcast — exact, and halves VALU work on v6e/v7x.
    """

    def kernel(w_ref, mask_ref, scale_ref, *rest):
        # w_ref:     SMEM (L,)            layer weights (scalar prefetch)
        # mask_ref:  VMEM (TB, TS, 1)     attention mask tile (float32)
        # scale_ref: VMEM (TB, 1, 1)      1/(sum(w)*clamp(sum(mask),1e-9)) per row
        # hs_refs:   L x VMEM (TB, TS, H) per-layer hidden-state tiles (native dtype)
        # out_ref:   VMEM (TB, 1, H)      pooled embeddings for this batch block
        # acc_ref:   VMEM (TB, 8, H) f32  running masked+weighted partial sums
        hs_refs = rest[:num_layers]
        out_ref = rest[num_layers]
        acc_ref = rest[num_layers + 1]

        s_idx = pl.program_id(1)

        @pl.when(s_idx == 0)
        def _():
            acc_ref[...] = jnp.zeros_like(acc_ref)

        tb_b, ts_b, h_b = hs_refs[0].shape
        m = mask_ref[...]                                        # (TB, TS, 1) f32
        m_cast = m.astype(hs_refs[0].dtype) if native_mask_mul else m
        # Hoisted once: JAX does not CSE broadcast_in_dim across the layer loop.
        m_b = jnp.broadcast_to(m_cast, (tb_b, ts_b, h_b))        # (TB, TS, H)

        acc = acc_ref[...]                                       # (TB, 8, H) f32
        for l in range(num_layers):                              # L static -> unrolled
            h_l = hs_refs[l][...]                                # (TB, TS, H)
            if native_mask_mul:
                hm = (h_l * m_b).astype(jnp.float32)             # exact: mask is {0,1}
            else:
                hm = h_l.astype(jnp.float32) * m_b
            # Partial sequence reduce with pure vreg adds; the cross-sublane
            # 8->1 XLU reduce is deferred to the finalize step.
            part = jnp.sum(hm.reshape(tb_b, ts_b // 8, 8, h_b), axis=1)   # (TB, 8, H)
            acc = acc + w_ref[l] * part                          # scalar weight (SMEM)
        acc_ref[...] = acc

        @pl.when(s_idx == pl.num_programs(1) - 1)
        def _():
            pooled = jnp.sum(acc_ref[...], axis=1, keepdims=True)   # (TB, 1, H)
            out_ref[...] = (pooled * scale_ref[...]).astype(out_ref.dtype)

    return kernel


# ---------------------------------------------------------------------------
# Generation-aware sizing
# ---------------------------------------------------------------------------
def _device_kind():
    try:
        return jax.devices()[0].device_kind.lower()
    except Exception:
        return ""


def _is_v5e():
    kind = _device_kind()
    return ("v5 lite" in kind) or ("v5e" in kind) or ("v5litepod" in kind)


def _vmem_capacity_bytes():
    try:
        return int(pltpu.get_tpu_info().vmem_capacity_bytes)
    except Exception:
        pass
    kind = _device_kind()
    if ("v4" in kind) or ("v5" in kind) or ("v6" in kind):
        return 128 * 1024 * 1024          # v4/v5e/v5p/v6e: 128 MiB VMEM
    return 64 * 1024 * 1024               # conservative: v7x per-TC VMEM


def _choose_tiles(B, S, H, L, itemsize, vmem_budget_bytes):
    """Pick (batch_tile, seq_tile).

    Targets ~1 MiB per (layer, buffer) DMA block to amortize per-grid-step
    overhead, while keeping the double-buffered footprint (hidden blocks +
    lane-padded mask blocks + hoisted broadcast temp + scratch) inside the
    generation-aware VMEM budget.  S must already be a multiple of 8.
    """

    def footprint(tb, ts):
        hid = 2 * L * tb * ts * H * itemsize      # double-buffered hidden blocks
        msk = 2 * tb * ts * 128 * 4               # mask blocks, lane-padded to 128
        brd = tb * ts * H * 4                     # hoisted mask-broadcast temp (<= f32)
        fix = tb * 8 * H * 4 + 2 * tb * H * 4 + (1 << 16)   # acc + out + slack
        return hid + msk + brd + fix

    # Sequence-tile candidates: multiples of 8 dividing S (S itself included).
    ts_cands = sorted({d for d in range(8, min(S, 8192) + 1, 8) if S % d == 0} | {S})

    def largest_divisor(n, cap):
        best = 1
        for d in range(1, min(n, cap) + 1):
            if n % d == 0:
                best = d
        return best

    # Batch tiling only when per-row blocks are small (short S / small H).
    tb = largest_divisor(B, 32) if S * H * itemsize < (512 << 10) else 1

    while True:
        ts = None
        for cand in ts_cands:                               # small -> large
            if footprint(tb, cand) > vmem_budget_bytes:
                break                                       # larger won't fit either
            ts = cand
            if tb * cand * H * itemsize >= (1 << 20):       # block ~1 MiB: stop growing
                break
        if ts is not None:
            return tb, ts
        if tb == 1:
            return 1, ts_cands[0]                           # smallest; let Mosaic try
        tb = largest_divisor(B, tb - 1)                     # shrink batch tile, retry


# ---------------------------------------------------------------------------
# Wrapper
# ---------------------------------------------------------------------------
def weighted_layer_pooling(all_hidden_states, attention_mask, layer_weights,
                           layer_start, *, seq_tile=None, batch_tile=None):
    """Pallas-backed equivalent of WeightedLayerPooling.forward."""
    layers = [jnp.asarray(h) for h in list(all_hidden_states)[layer_start:]]
    L = len(layers)
    B, S, H = layers[0].shape
    dtype = layers[0].dtype

    mask_f32 = attention_mask.astype(jnp.float32)                       # (B, S)

    # Deferred normalization, precomputed per row on the host:
    #   scale_b = 1 / (sum(w) * clamp(sum(mask_b), 1e-9))
    wsum = jnp.sum(layer_weights.astype(jnp.float32))
    msum = jnp.maximum(jnp.sum(mask_f32, axis=1, keepdims=True), jnp.float32(1e-9))
    scale = (1.0 / (wsum * msum)).reshape(B, 1, 1)                       # (B, 1, 1)

    # Pad S to a sublane multiple (8): guarantees a tileable, VMEM-safe block
    # for any S.  Padded rows have mask 0 -> no numerics change.
    if S % 8 != 0:
        pad = (-S) % 8
        # TODO(synk): rare path — this copies the hidden states once in HBM;
        # a streaming in-kernel pad would avoid the copy.
        layers = [jnp.pad(h, ((0, 0), (0, pad), (0, 0))) for h in layers]
        mask_f32 = jnp.pad(mask_f32, ((0, 0), (0, pad)))
        S = S + pad

    mask = mask_f32.reshape(B, S, 1)
    w = layer_weights.astype(jnp.float32)

    vmem_cap = _vmem_capacity_bytes()
    tb, ts = _choose_tiles(B, S, H, L, dtype.itemsize, int(0.6 * vmem_cap))
    if batch_tile is not None:
        tb = batch_tile
    if seq_tile is not None:
        ts = seq_tile
    assert B % tb == 0, "batch must be divisible by the batch tile"
    assert S % ts == 0 and ts % 8 == 0, "bad sequence tile"

    n_b, n_s = B // tb, S // ts

    # bf16 mask-mul is exact (mask is {0,1}) and halves VALU work, but only on
    # chips with a bf16 VPU (v6e/v7x); keep f32-first order on v5e.
    native_mask_mul = (dtype == jnp.bfloat16) and not _is_v5e()

    hs_spec = pl.BlockSpec((tb, ts, H), lambda b, s, w_ref: (b, s, 0))
    mask_spec = pl.BlockSpec((tb, ts, 1), lambda b, s, w_ref: (b, s, 0))
    scale_spec = pl.BlockSpec((tb, 1, 1), lambda b, s, w_ref: (b, 0, 0))
    out_spec = pl.BlockSpec((tb, 1, H), lambda b, s, w_ref: (b, 0, 0))

    vmem_limit = int(min(0.8 * vmem_cap, vmem_cap - (8 << 20)))

    out = pl.pallas_call(
        make_wlp_kernel(L, native_mask_mul),
        out_shape=jax.ShapeDtypeStruct((B, 1, H), jnp.float32),
        grid_spec=pltpu.PrefetchScalarGridSpec(
            num_scalar_prefetch=1,                     # layer weights -> SMEM
            grid=(n_b, n_s),                           # batch parallel, seq reduction
            in_specs=[mask_spec, scale_spec] + [hs_spec] * L,
            out_specs=out_spec,
            scratch_shapes=[pltpu.VMEM((tb, 8, H), jnp.float32)],
        ),
        compiler_params=pltpu.CompilerParams(
            dimension_semantics=("parallel", "arbitrary"),
            vmem_limit_bytes=vmem_limit),
    )(w, mask, scale, *layers)
    return out.reshape(B, H)


# ---------------------------------------------------------------------------
# Pure-JAX reference (matches the PyTorch forward semantics)
# ---------------------------------------------------------------------------
def ref_forward(all_hidden_states, attention_mask, layer_weights, layer_start):
    hs = jnp.stack(list(all_hidden_states), axis=0)[layer_start:]
    wf = layer_weights[:, None, None, None]
    weighted_average = (wf * hs).sum(axis=0) / layer_weights.sum()
    m = attention_mask.astype(jnp.float32)[..., None]
    sum_embeddings = jnp.sum(weighted_average * m, axis=1)
    sum_mask = jnp.maximum(m.sum(axis=1), 1e-9)
    return sum_embeddings / sum_mask


if __name__ == "__main__":
    # Module config (synthetic): 12 hidden layers, pool over the last 4.
    num_hidden_layers = 12
    layer_start = 9
    L = num_hidden_layers + 1 - layer_start          # 4

    B, S, H = 2, 8, 128

    key = jax.random.PRNGKey(0)
    keys = jax.random.split(key, num_hidden_layers + 1)
    all_hidden_states = [
        jax.random.normal(k, (B, S, H), dtype=jnp.float32) for k in keys
    ]

    # Deterministic attention mask: first sample full length, second length 5.
    lengths = jnp.array([S, 5], dtype=jnp.int32)
    attention_mask = (jnp.arange(S)[None, :] < lengths[:, None]).astype(jnp.int32)

    # Matches nn.Parameter(torch.tensor([1] * L, dtype=torch.float)).
    layer_weights = jnp.ones((L,), dtype=jnp.float32)

    # float32 path
    out = weighted_layer_pooling(all_hidden_states, attention_mask,
                                 layer_weights, layer_start)
    out = jax.block_until_ready(out)
    ref = ref_forward(all_hidden_states, attention_mask, layer_weights,
                      layer_start)
    assert out.shape == (B, H)
    assert jnp.allclose(out, ref, atol=1e-5, rtol=1e-5), "mismatch vs reference (f32)"

    # Native-bf16 hidden states path (no wrapper upcast; bf16 mask-mul on
    # v6e/v7x, f32 accumulation in-kernel).
    hs_bf16 = [h.astype(jnp.bfloat16) for h in all_hidden_states]
    out_bf16 = jax.block_until_ready(
        weighted_layer_pooling(hs_bf16, attention_mask, layer_weights, layer_start))
    ref_bf16 = ref_forward([h.astype(jnp.float32) for h in hs_bf16],
                           attention_mask, layer_weights, layer_start)
    assert jnp.allclose(out_bf16, ref_bf16, atol=1e-4, rtol=1e-4), \
        "mismatch vs reference (bf16)"

    print("KERNEL_OK")
</pallas_src>

<mosaic_0001>
module attributes {stable_mosaic.version = 11 : i64} {
  func.func @kernel(%arg0: i32, %arg1: i32, %arg2: memref<4xf32, #tpu.memory_space<smem>>, %arg3: memref<2x8x1xf32, #tpu.memory_space<vmem>>, %arg4: memref<2x1x1xf32, #tpu.memory_space<vmem>>, %arg5: memref<2x8x128xf32, #tpu.memory_space<vmem>>, %arg6: memref<2x8x128xf32, #tpu.memory_space<vmem>>, %arg7: memref<2x8x128xf32, #tpu.memory_space<vmem>>, %arg8: memref<2x8x128xf32, #tpu.memory_space<vmem>>, %arg9: memref<2x1x128xf32, #tpu.memory_space<vmem>>, %arg10: memref<2x8x128xf32, #tpu.memory_space<vmem>>) attributes {dimension_semantics = [#tpu.dimension_semantics<parallel>, #tpu.dimension_semantics<arbitrary>], iteration_bounds = array<i64: 1, 1>, scalar_prefetch = 1 : i64, scratch_operands = 1 : i64, tpu.core_type = #tpu.core_type<tc>, window_params = [{transform_indices = @transform_0, window_bounds = array<i64: 2, 8, 1>}, {transform_indices = @transform_1, window_bounds = array<i64: 2, 1, 1>}, {transform_indices = @transform_2, window_bounds = array<i64: 2, 8, 128>}, {transform_indices = @transform_3, window_bounds = array<i64: 2, 8, 128>}, {transform_indices = @transform_4, window_bounds = array<i64: 2, 8, 128>}, {transform_indices = @transform_5, window_bounds = array<i64: 2, 8, 128>}, {transform_indices = @transform_6, window_bounds = array<i64: 2, 1, 128>}]} {
    %c0_i32 = arith.constant 0 : i32
    %0 = arith.cmpi eq, %arg1, %c0_i32 : i32
    %1 = arith.extui %0 : i1 to i32
    %c0_i32_0 = arith.constant 0 : i32
    %2 = arith.cmpi ne, %1, %c0_i32_0 : i32
    scf.if %2 {
      %cst_27 = arith.constant 0.000000e+00 : f32
      %43 = vector.broadcast %cst_27 : f32 to vector<2x8x128xf32>
      %c0_28 = arith.constant 0 : index
      %c0_29 = arith.constant 0 : index
      %c0_30 = arith.constant 0 : index
      %44 = vector.load %arg10[%c0_28, %c0_29, %c0_30] : memref<2x8x128xf32, #tpu.memory_space<vmem>>, vector<2x8x128xf32>
      tpu.vector_store %arg10[%c0_28, %c0_29, %c0_30], %43 {strides = array<i32>} : memref<2x8x128xf32, #tpu.memory_space<vmem>>, vector<2x8x128xf32>,
    } else {
    }
    %c0 = arith.constant 0 : index
    %c0_1 = arith.constant 0 : index
    %c0_2 = arith.constant 0 : index
    %3 = vector.load %arg3[%c0, %c0_1, %c0_2] : memref<2x8x1xf32, #tpu.memory_space<vmem>>, vector<2x8x1xf32>
    %4 = vector.shape_cast %3 : vector<2x8x1xf32> to vector<2x8x1xf32>
    %5 = vector.broadcast %4 : vector<2x8x1xf32> to vector<2x8x128xf32>
    %c0_3 = arith.constant 0 : index
    %c0_4 = arith.constant 0 : index
    %c0_5 = arith.constant 0 : index
    %6 = vector.load %arg10[%c0_3, %c0_4, %c0_5] : memref<2x8x128xf32, #tpu.memory_space<vmem>>, vector<2x8x128xf32>
    %c0_6 = arith.constant 0 : index
    %c0_7 = arith.constant 0 : index
    %c0_8 = arith.constant 0 : index
    %7 = vector.load %arg5[%c0_6, %c0_7, %c0_8] : memref<2x8x128xf32, #tpu.memory_space<vmem>>, vector<2x8x128xf32>
    %8 = arith.mulf %7, %5 : vector<2x8x128xf32>
    %9 = vector.shape_cast %8 : vector<2x8x128xf32> to vector<2x1x8x128xf32>
    %cst = arith.constant dense<0.000000e+00> : vector<2x8x128xf32>
    %10 = vector.multi_reduction <add>, %9, %cst [1] : vector<2x1x8x128xf32> to vector<2x8x128xf32>
    %c0_9 = arith.constant 0 : index
    %11 = memref.load %arg2[%c0_9] : memref<4xf32, #tpu.memory_space<smem>>
    %12 = vector.broadcast %11 : f32 to vector<2x8x128xf32>
    %13 = arith.mulf %12, %10 : vector<2x8x128xf32>
    %14 = arith.addf %6, %13 : vector<2x8x128xf32>
    %c0_10 = arith.constant 0 : index
    %c0_11 = arith.constant 0 : index
    %c0_12 = arith.constant 0 : index
    %15 = vector.load %arg6[%c0_10, %c0_11, %c0_12] : memref<2x8x128xf32, #tpu.memory_space<vmem>>, vector<2x8x128xf32>
    %16 = arith.mulf %15, %5 : vector<2x8x128xf32>
    %17 = vector.shape_cast %16 : vector<2x8x128xf32> to vector<2x1x8x128xf32>
    %cst_13 = arith.constant dense<0.000000e+00> : vector<2x8x128xf32>
    %18 = vector.multi_reduction <add>, %17, %cst_13 [1] : vector<2x1x8x128xf32> to vector<2x8x128xf32>
    %c1 = arith.constant 1 : index
    %19 = memref.load %arg2[%c1] : memref<4xf32, #tpu.memory_space<smem>>
    %20 = vector.broadcast %19 : f32 to vector<2x8x128xf32>
    %21 = arith.mulf %20, %18 : vector<2x8x128xf32>
    %22 = arith.addf %14, %21 : vector<2x8x128xf32>
    %c0_14 = arith.constant 0 : index
    %c0_15 = arith.constant 0 : index
    %c0_16 = arith.constant 0 : index
    %23 = vector.load %arg7[%c0_14, %c0_15, %c0_16] : memref<2x8x128xf32, #tpu.memory_space<vmem>>, vector<2x8x128xf32>
    %24 = arith.mulf %23, %5 : vector<2x8x128xf32>
    %25 = vector.shape_cast %24 : vector<2x8x128xf32> to vector<2x1x8x128xf32>
    %cst_17 = arith.constant dense<0.000000e+00> : vector<2x8x128xf32>
    %26 = vector.multi_reduction <add>, %25, %cst_17 [1] : vector<2x1x8x128xf32> to vector<2x8x128xf32>
    %c2 = arith.constant 2 : index
    %27 = memref.load %arg2[%c2] : memref<4xf32, #tpu.memory_space<smem>>
    %28 = vector.broadcast %27 : f32 to vector<2x8x128xf32>
    %29 = arith.mulf %28, %26 : vector<2x8x128xf32>
    %30 = arith.addf %22, %29 : vector<2x8x128xf32>
    %c0_18 = arith.constant 0 : index
    %c0_19 = arith.constant 0 : index
    %c0_20 = arith.constant 0 : index
    %31 = vector.load %arg8[%c0_18, %c0_19, %c0_20] : memref<2x8x128xf32, #tpu.memory_space<vmem>>, vector<2x8x128xf32>
    %32 = arith.mulf %31, %5 : vector<2x8x128xf32>
    %33 = vector.shape_cast %32 : vector<2x8x128xf32> to vector<2x1x8x128xf32>
    %cst_21 = arith.constant dense<0.000000e+00> : vector<2x8x128xf32>
    %34 = vector.multi_reduction <add>, %33, %cst_21 [1] : vector<2x1x8x128xf32> to vector<2x8x128xf32>
    %c3 = arith.constant 3 : index
    %35 = memref.load %arg2[%c3] : memref<4xf32, #tpu.memory_space<smem>>
    %36 = vector.broadcast %35 : f32 to vector<2x8x128xf32>
    %37 = arith.mulf %36, %34 : vector<2x8x128xf32>
    %38 = arith.addf %30, %37 : vector<2x8x128xf32>
    %c0_22 = arith.constant 0 : index
    %c0_23 = arith.constant 0 : index
    %c0_24 = arith.constant 0 : index
    %39 = vector.load %arg10[%c0_22, %c0_23, %c0_24] : memref<2x8x128xf32, #tpu.memory_space<vmem>>, vector<2x8x128xf32>
    tpu.vector_store %arg10[%c0_22, %c0_23, %c0_24], %38 {strides = array<i32>} : memref<2x8x128xf32, #tpu.memory_space<vmem>>, vector<2x8x128xf32>,
    %c0_i32_25 = arith.constant 0 : i32
    %40 = arith.cmpi eq, %arg1, %c0_i32_25 : i32
    %41 = arith.extui %40 : i1 to i32
    %c0_i32_26 = arith.constant 0 : i32
    %42 = arith.cmpi ne, %41, %c0_i32_26 : i32
    scf.if %42 {
      %c0_27 = arith.constant 0 : index
      %c0_28 = arith.constant 0 : index
      %c0_29 = arith.constant 0 : index
      %43 = vector.load %arg10[%c0_27, %c0_28, %c0_29] : memref<2x8x128xf32, #tpu.memory_space<vmem>>, vector<2x8x128xf32>
      %cst_30 = arith.constant dense<0.000000e+00> : vector<2x128xf32>
      %44 = vector.multi_reduction <add>, %43, %cst_30 [1] : vector<2x8x128xf32> to vector<2x128xf32>
      %45 = vector.shape_cast %44 : vector<2x128xf32> to vector<2x1x128xf32>
      %c0_31 = arith.constant 0 : index
      %c0_32 = arith.constant 0 : index
      %c0_33 = arith.constant 0 : index
      %46 = vector.load %arg4[%c0_31, %c0_32, %c0_33] : memref<2x1x1xf32, #tpu.memory_space<vmem>>, vector<2x1x1xf32>
      %47 = vector.broadcast %46 : vector<2x1x1xf32> to vector<2x1x128xf32>
      %48 = arith.mulf %45, %47 : vector<2x1x128xf32>
      %c0_34 = arith.constant 0 : index
      %c0_35 = arith.constant 0 : index
      %c0_36 = arith.constant 0 : index
      %49 = vector.load %arg9[%c0_34, %c0_35, %c0_36] : memref<2x1x128xf32, #tpu.memory_space<vmem>>, vector<2x1x128xf32>
      tpu.vector_store %arg9[%c0_34, %c0_35, %c0_36], %48 {strides = array<i32>} : memref<2x1x128xf32, #tpu.memory_space<vmem>>, vector<2x1x128xf32>,
    } else {
    }
    return
  }
  func.func @transform_0(%arg0: i32, %arg1: i32, %arg2: memref<4xf32, #tpu.memory_space<smem>>) -> (i32, i32, i32) {
    %c0_i32 = arith.constant 0 : i32
    %c0_i32_0 = arith.constant 0 : i32
    return %arg0, %arg1, %c0_i32 : i32, i32, i32
  }
  func.func @transform_1(%arg0: i32, %arg1: i32, %arg2: memref<4xf32, #tpu.memory_space<smem>>) -> (i32, i32, i32) {
    %c0_i32 = arith.constant 0 : i32
    %c0_i32_0 = arith.constant 0 : i32
    %c0_i32_1 = arith.constant 0 : i32
    return %arg0, %c0_i32, %c0_i32_0 : i32, i32, i32
  }
  func.func @transform_2(%arg0: i32, %arg1: i32, %arg2: memref<4xf32, #tpu.memory_space<smem>>) -> (i32, i32, i32) {
    %c0_i32 = arith.constant 0 : i32
    %c0_i32_0 = arith.constant 0 : i32
    return %arg0, %arg1, %c0_i32 : i32, i32, i32
  }
  func.func @transform_3(%arg0: i32, %arg1: i32, %arg2: memref<4xf32, #tpu.memory_space<smem>>) -> (i32, i32, i32) {
    %c0_i32 = arith.constant 0 : i32
    %c0_i32_0 = arith.constant 0 : i32
    return %arg0, %arg1, %c0_i32 : i32, i32, i32
  }
  func.func @transform_4(%arg0: i32, %arg1: i32, %arg2: memref<4xf32, #tpu.memory_space<smem>>) -> (i32, i32, i32) {
    %c0_i32 = arith.constant 0 : i32
    %c0_i32_0 = arith.constant 0 : i32
    return %arg0, %arg1, %c0_i32 : i32, i32, i32
  }
  func.func @transform_5(%arg0: i32, %arg1: i32, %arg2: memref<4xf32, #tpu.memory_space<smem>>) -> (i32, i32, i32) {
    %c0_i32 = arith.constant 0 : i32
    %c0_i32_0 = arith.constant 0 : i32
    return %arg0, %arg1, %c0_i32 : i32, i32, i32
  }
  func.func @transform_6(%arg0: i32, %arg1: i32, %arg2: memref<4xf32, #tpu.memory_space<smem>>) -> (i32, i32, i32) {
    %c0_i32 = arith.constant 0 : i32
    %c0_i32_0 = arith.constant 0 : i32
    %c0_i32_1 = arith.constant 0 : i32
    return %arg0, %c0_i32, %c0_i32_0 : i32, i32, i32
  }
}

</mosaic_0001>

<llo_original>
// kernel: tpu_custom_call.1
$region0: #{tpu_custom_call.1}
  #allocation0 [shape = 'u32[]', space=smem, size = 0x4, offset = 0x4, fixed_abs, tag = 'smem constant byte address 0x4 - core index']
  #allocation1 [shape = 'u32[144,128]{1,0:T(1,128)}', space=vmem, size = 0x12000, scoped, tag = 'internal scratch']
  #allocation2 [shape = 'f32[2,8,128]{2,1,0:T(8,128)}', space=vmem, size = 0x2000, scoped, tag = 'scratch operand']
  #allocation3 [shape = 's32[1]{0}', space=sflag, size = 0x4, scoped, tag = 'scoped memory for tpu_custom_call.1']
  #allocation4 [shape = 'u8[512]{0}', space=smem, size = 0x200, scoped, tag = 'prefetched SMEM operand 0']
  %s0 = inlined_call_operand.vmem [shape: f32[4], index: 0, kind: input, shape index: {}]
  %s1 = inlined_call_operand.vmem [shape: f32[2,8,1], index: 1, kind: input, shape index: {}]
  %s2 = inlined_call_operand.vmem [shape: f32[2,1,1], index: 2, kind: input, shape index: {}]
  %s3 = inlined_call_operand.vmem [shape: f32[2,8,128], index: 3, kind: input, shape index: {}]
  %s4 = inlined_call_operand.vmem [shape: f32[2,8,128], index: 4, kind: input, shape index: {}]
  %s5 = inlined_call_operand.hbm [shape: f32[2,8,128], index: 5, kind: input, shape index: {}]
  %s6 = inlined_call_operand.hbm [shape: f32[2,8,128], index: 6, kind: input, shape index: {}]
  %s7 = inlined_call_operand.hbm [shape: f32[2,1,128], index: 7, kind: output, shape index: {}]
  %s8 = sld [smem:[#allocation0]]
  $region50: #{tpu_custom_call.1} parent=0
    _
  %s10 = ssub.s32 1, %s8
  %s11 = scalar_select 0, %s10, %s8
  %s12 = sshll.u32 %s0, 4
  %s13 = int_to_ptr.vmem [resolvable:$true] %s12
  %15 = dma.vmem_to_smem %s13, 16, [#allocation4], [#allocation3]
  %16 = dma.done [#allocation3], 16
  %17 = sfence
  $region1: #{tpu_custom_call.1} parent=0
    #allocation5 [shape = 'u8[8192]{0}', space=vmem, size = 0x2000, scoped, tag = 'input window, operand 5, single buffered']
    #allocation6 [shape = 's32[1]{0}', space=sflag, size = 0x4, scoped, tag = 'scoped memory for tpu_custom_call.1']
    #allocation7 [shape = 's32[1]{0}', space=sflag, size = 0x4, scoped, tag = 'scoped memory for tpu_custom_call.1']
    #allocation8 [shape = 'u8[8192]{0}', space=vmem, size = 0x2000, scoped, tag = 'input window, operand 6, single buffered']
    #allocation9 [shape = 's32[1]{0}', space=sflag, size = 0x4, scoped, tag = 'scoped memory for tpu_custom_call.1']
    #allocation10 [shape = 'u8[1024]{0}', space=vmem, size = 0x400, scoped, tag = 'output window, operand 0, single buffered']
    %18 = vsyncpa [#allocation6], 0
    %19 = vsyncpa [#allocation9], 0
    %20 = vsyncpa [#allocation7], 0
    // Predicated region
    $region2: #{tpu_custom_call.1} parent=1 // pred_check
      _
    $region3: #{tpu_custom_call.1} parent=1 // pred_check_branch
      %22 = sbr.rel (0) target = $region5
    $region4: #{tpu_custom_call.1} parent=1 // pred_region
      _
    $region5: #{tpu_custom_call.1} parent=1 // pred_fallthru
      _
    // Predicated region
    $region6: #{tpu_custom_call.1} parent=1 // pred_check
      _
    $region7: #{tpu_custom_call.1} parent=1 // pred_check_branch
      %24 = sbr.rel (0) target = $region9
    $region8: #{tpu_custom_call.1} parent=1 // pred_region
      _
    $region9: #{tpu_custom_call.1} parent=1 // pred_fallthru
      _
    // Predicated region
    $region10: #{tpu_custom_call.1} parent=1 // pred_check
      _
    $region11: #{tpu_custom_call.1} parent=1 // pred_check_branch
      %26 = sbr.rel (0) target = $region13
    $region12: #{tpu_custom_call.1} parent=1 // pred_region
      _
    $region13: #{tpu_custom_call.1} parent=1 // pred_fallthru
      _
    // Predicated region
    $region14: #{tpu_custom_call.1} parent=1 // pred_check
      _
    $region15: #{tpu_custom_call.1} parent=1 // pred_check_branch
      %28 = sbr.rel (0) target = $region17
    $region16: #{tpu_custom_call.1} parent=1 // pred_region
      _
    $region17: #{tpu_custom_call.1} parent=1 // pred_fallthru
      _
    // Predicated region
    $region18: #{tpu_custom_call.1} parent=1 // pred_check
      _
    $region19: #{tpu_custom_call.1} parent=1 // pred_check_branch
      %30 = sbr.rel (0) target = $region21
    $region20: #{tpu_custom_call.1} parent=1 // pred_region
      %s32 = ssub.s32 256, 256
      %33 = vsyncadd [#allocation6], %s32
      %s34 = sshll.u32 [#allocation5], 4
      %s35 = int_to_ptr.vmem [resolvable:$true] %s34
      %40 = dma.hbm_to_vmem [thread:$0]  %s5, 256, %s35, [#allocation6], 128, 128, 8
    $region21: #{tpu_custom_call.1} parent=1 // pred_fallthru
      _
    // Predicated region
    $region22: #{tpu_custom_call.1} parent=1 // pred_check
      _
    $region23: #{tpu_custom_call.1} parent=1 // pred_check_branch
      %42 = sbr.rel (0) target = $region25
    $region24: #{tpu_custom_call.1} parent=1 // pred_region
      %s44 = ssub.s32 256, 256
      %45 = vsyncadd [#allocation9], %s44
      %s46 = sshll.u32 [#allocation8], 4
      %s47 = int_to_ptr.vmem [resolvable:$true] %s46
      %52 = dma.hbm_to_vmem [thread:$0]  %s6, 256, %s47, [#allocation9], 128, 128, 8
    $region25: #{tpu_custom_call.1} parent=1 // pred_fallthru
      _
    // Predicated region
    $region26: #{tpu_custom_call.1} parent=1 // pred_check
      _
    $region27: #{tpu_custom_call.1} parent=1 // pred_check_branch
      %54 = sbr.rel (0) target = $region29
    $region28: #{tpu_custom_call.1} parent=1 // pred_region
      %55 = dma.done [#allocation6], 256
    $region29: #{tpu_custom_call.1} parent=1 // pred_fallthru
      _
    // Predicated region
    $region30: #{tpu_custom_call.1} parent=1 // pred_check
      _
    $region31: #{tpu_custom_call.1} parent=1 // pred_check_branch
      %57 = sbr.rel (0) target = $region33
    $region32: #{tpu_custom_call.1} parent=1 // pred_region
      %58 = dma.done [#allocation9], 256
    $region33: #{tpu_custom_call.1} parent=1 // pred_fallthru
      _
    %p59 = scmp.eq.s32.totalorder 0, 0
    // Predicated region
    $region34: #{tpu_custom_call.1} parent=1 // pred_check
      %p60 = pneg %p59
    $region35: #{tpu_custom_call.1} parent=1 // pred_check_branch
      %62 = sbr.rel (%p60) target = $region37
    $region36: #{tpu_custom_call.1} parent=1 // pred_region
      %63 = vst [vmem:[#allocation2] sm:$0xff] 0.0
      %64 = vst [vmem:[#allocation2 + $0x8] sm:$0xff] 0.0
    $region37: #{tpu_custom_call.1} parent=1 // pred_fallthru
      _
    %v65 = vld [vmem:[%s1] sm:$0xff]
    %v66 = vld [vmem:[%s1 + $0x8] sm:$0xff]
    %68 = vset.pattern.permute.xlu0 0
    %69 = vperm.xlu0 %68, %v65
    %v70 = vpop.permute.xlu0 %69
    %73 = vset.pattern.permute.xlu0 0
    %74 = vperm.xlu0 %73, %v66
    %v75 = vpop.permute.xlu0 %74
    %v77 = vld [vmem:[#allocation2] sm:$0xff]
    %v78 = vld [vmem:[#allocation2 + $0x8] sm:$0xff]
    %v79 = vld [vmem:[%s3] sm:$0xff]
    %v80 = vld [vmem:[%s3 + $0x8] sm:$0xff]
    %v81 = vmul.f32 %v79, %v70
    %v82 = vmul.f32 %v80, %v75
    %v83 = vadd.f32 %v81, 0.0
    %v84 = vadd.f32 %v82, 0.0
    %s85 = sld [smem:[#allocation4]]
    %v86 = vstv %s85
    %v87 = vmul.f32 %v86, %v83
    %v88 = vmul.f32 %v86, %v84
    %v89 = vadd.f32 %v77, %v87
    %v90 = vadd.f32 %v78, %v88
    %v91 = vld [vmem:[%s4] sm:$0xff]
    %v92 = vld [vmem:[%s4 + $0x8] sm:$0xff]
    %v93 = vmul.f32 %v91, %v70
    %v94 = vmul.f32 %v92, %v75
    %v95 = vadd.f32 %v93, 0.0
    %v96 = vadd.f32 %v94, 0.0
    %s97 = sld [smem:[#allocation4 + $0x1]]
    %v98 = vstv %s97
    %v99 = vmul.f32 %v98, %v95
    %v100 = vmul.f32 %v98, %v96
    %v101 = vadd.f32 %v89, %v99
    %v102 = vadd.f32 %v90, %v100
    %v103 = vld [vmem:[#allocation5] sm:$0xff]
    %v104 = vld [vmem:[#allocation5 + $0x8] sm:$0xff]
    %v105 = vmul.f32 %v103, %v70
    %v106 = vmul.f32 %v104, %v75
    %v107 = vadd.f32 %v105, 0.0
    %v108 = vadd.f32 %v106, 0.0
    %s109 = sld [smem:[#allocation4 + $0x2]]
    %v110 = vstv %s109
    %v111 = vmul.f32 %v110, %v107
    %v112 = vmul.f32 %v110, %v108
    %v113 = vadd.f32 %v101, %v111
    %v114 = vadd.f32 %v102, %v112
    %v115 = vld [vmem:[#allocation8] sm:$0xff]
    %v116 = vld [vmem:[#allocation8 + $0x8] sm:$0xff]
    %v117 = vmul.f32 %v115, %v70
    %v118 = vmul.f32 %v116, %v75
    %v119 = vadd.f32 %v117, 0.0
    %v120 = vadd.f32 %v118, 0.0
    %s121 = sld [smem:[#allocation4 + $0x3]]
    %v122 = vstv %s121
    %v123 = vmul.f32 %v122, %v119
    %v124 = vmul.f32 %v122, %v120
    %v125 = vadd.f32 %v113, %v123
    %v126 = vadd.f32 %v114, %v124
    %127 = vst [vmem:[#allocation2] sm:$0xff] %v125
    %128 = vst [vmem:[#allocation2 + $0x8] sm:$0xff] %v126
    // Predicated region
    $region38: #{tpu_custom_call.1} parent=1 // pred_check
      %p129 = pneg %p59
    $region39: #{tpu_custom_call.1} parent=1 // pred_check_branch
      %131 = sbr.rel (%p129) target = $region41
    $region40: #{tpu_custom_call.1} parent=1 // pred_region
      %v132 = vld [vmem:[#allocation2] sm:$0xff]
      %v133 = vld [vmem:[#allocation2 + $0x8] sm:$0xff]
      %v134 = vrot.slane %v132, 4
      %v135 = vadd.f32 %v132, %v134
      %v136 = vrot.slane %v135, 2
      %v137 = vadd.f32 %v135, %v136
      %v138 = vrot.slane %v137, 1
      %v139 = vadd.f32 %v137, %v138
      %v140 = vrot.slane %v133, 4
      %v141 = vadd.f32 %v133, %v140
      %v142 = vrot.slane %v141, 2
      %v143 = vadd.f32 %v141, %v142
      %v144 = vrot.slane %v143, 1
      %v145 = vadd.f32 %v143, %v144
      %v146 = vld [vmem:[%s2] sm:$0x1]
      %v147 = vld [vmem:[%s2 + $0x1] sm:$0x1]
      %149 = vset.pattern.permute.xlu0 0
      %150 = vperm.xlu0 %149, %v146
      %v151 = vpop.permute.xlu0 %150
      %v153 = vlaneseq
      %v154 = vshrl.u32 %v153, 7
      %v155 = vsub.s32 0, %v154
      %v156 = vrot.slane %v151, %v155
      %158 = vset.pattern.permute.xlu0 0
      %159 = vperm.xlu0 %158, %v147
      %v160 = vpop.permute.xlu0 %159
      %v162 = vlaneseq
      %v163 = vshrl.u32 %v162, 7
      %v164 = vsub.s32 0, %v163
      %v165 = vrot.slane %v160, %v164
      %v166 = vmul.f32 %v139, %v156
      %v167 = vmul.f32 %v145, %v165
      %168 = vst [vmem:[#allocation10] sm:$0x1] %v166
      %169 = vst [vmem:[#allocation10 + $0x1] sm:$0x1] %v167
    $region41: #{tpu_custom_call.1} parent=1 // pred_fallthru
      _
    // Predicated region
    $region42: #{tpu_custom_call.1} parent=1 // pred_check
      _
    $region43: #{tpu_custom_call.1} parent=1 // pred_check_branch
      %171 = sbr.rel (0) target = $region45
    $region44: #{tpu_custom_call.1} parent=1 // pred_region
      %s173 = ssub.s32 32, 32
      %174 = vsyncadd [#allocation7], %s173
      %s175 = sshll.u32 [#allocation10], 4
      %s176 = int_to_ptr.vmem [resolvable:$true] %s175
      %181 = dma.vmem_to_hbm [thread:$0]  %s176, 32, %s7, [#allocation7], 16, 16, 1
    $region45: #{tpu_custom_call.1} parent=1 // pred_fallthru
      _
    // Predicated region
    $region46: #{tpu_custom_call.1} parent=1 // pred_check
      _
    $region47: #{tpu_custom_call.1} parent=1 // pred_check_branch
      %183 = sbr.rel (0) target = $region49
    $region48: #{tpu_custom_call.1} parent=1 // pred_region
      %184 = dma.done [#allocation7], 32
    $region49: #{tpu_custom_call.1} parent=1 // pred_fallthru
      _
    %185 = vsyncpa [#allocation6], 1
    %186 = vsyncpa [#allocation9], 1
    %187 = vsyncpa [#allocation7], 1

</llo_original>
